<compile_context>
chip_gen: v6e
topology: v6e:2x2x1
jax: 0.10.0
libtpu: 0.0.40
codegen_flags: <defaults>
</compile_context>

<pallas_src>
import jax
import jax.numpy as jnp
from jax.experimental import pallas as pl
from jax.experimental.pallas import tpu as pltpu


EPS = 1e-6


def _round_up(n, m):
    return ((n + m - 1) // m) * m


def _sublayer_connection_kernel(x_ref, gamma_ref, beta_ref, w_ref, b_ref,
                                o_ref, normed_ref):
    """One (row-tile i, col-tile j) step of: out = x + (LN(x) @ W + b)."""
    j = pl.program_id(1)
    tn = o_ref.shape[-1]

    # LayerNorm once per row tile (j == 0); cache normed rows (already cast to
    # the MXU input dtype) in VMEM scratch for the inner column loop.
    @pl.when(j == 0)
    def _():
        x = x_ref[...].astype(jnp.float32)                       # (TR, D)
        d = x.shape[-1]
        mean = jnp.mean(x, axis=-1, keepdims=True)               # (TR, 1)
        diff = x - mean
        # torch.std default: unbiased (N-1); eps added to std (not variance).
        var_unbiased = jnp.sum(diff * diff, axis=-1, keepdims=True) / (d - 1)
        std = jnp.sqrt(var_unbiased)
        inv = pl.reciprocal(std + EPS)                           # per-row, exact
        normed = gamma_ref[...] * (diff * inv) + beta_ref[...]
        normed_ref[...] = normed.astype(normed_ref.dtype)

    # Sublayer: dense projection on the MXU (bf16 in / fp32 accumulate).
    y = jnp.dot(normed_ref[...], w_ref[...],
                preferred_element_type=jnp.float32)              # (TR, TN)
    y = y + b_ref[...].astype(jnp.float32)

    # Dropout = identity (eval mode); residual add against this column slab.
    col0 = j * tn
    if tn % 128 == 0:
        col0 = pl.multiple_of(col0, 128)
    x_res = x_ref[:, pl.ds(col0, tn)].astype(jnp.float32)
    o_ref[...] = (x_res + y).astype(o_ref.dtype)


def sublayer_connection(x, gamma, beta, w, b, *, tile_rows=256, tile_cols=512,
                        mxu_dtype=jnp.bfloat16):
    """x: (B, S, D); gamma, beta, b: (D,); w: (D, D)."""
    B, S, D = x.shape
    rows = B * S

    # Row tile: large by default (pipeline-overhead & MXU utilization), clamped
    # to the (8-aligned) actual row count; pad rows to a tile multiple.
    tile_rows = _round_up(max(tile_rows, 8), 8)
    tr = min(tile_rows, _round_up(rows, 8))
    rows_p = _round_up(rows, tr)

    # Column tile for W / bias / output; fall back to full width when D does
    # not divide cleanly (keeps the (8,128) BlockSpec constraint satisfied).
    tn = tile_cols if (tile_cols % 128 == 0 and D % tile_cols == 0) else D

    x2 = x.reshape(rows, D)
    if rows_p != rows:
        x2 = jnp.pad(x2, ((0, rows_p - rows), (0, 0)))

    gamma2 = gamma.reshape(1, D).astype(jnp.float32)
    beta2 = beta.reshape(1, D).astype(jnp.float32)
    b2 = b.reshape(1, D).astype(jnp.float32)
    w_mxu = w.astype(mxu_dtype)

    grid = (rows_p // tr, D // tn)

    # VMEM budget: double-buffered x / out / W / bias tiles + normed scratch.
    x_bytes = x2.dtype.itemsize
    mxu_bytes = jnp.dtype(mxu_dtype).itemsize
    vmem_bytes = (
        2 * tr * D * x_bytes          # x row tiles
        + 2 * tr * tn * x_bytes       # out tiles
        + 2 * D * tn * mxu_bytes      # W column tiles
        + tr * D * mxu_bytes          # normed scratch
        + 2 * 3 * D * 4               # gamma / beta / bias
    )
    vmem_limit = min(max(int(vmem_bytes * 1.5), 32 * 1024 * 1024),
                     64 * 1024 * 1024)

    out2 = pl.pallas_call(
        _sublayer_connection_kernel,
        out_shape=jax.ShapeDtypeStruct((rows_p, D), x.dtype),
        grid_spec=pltpu.PrefetchScalarGridSpec(
            num_scalar_prefetch=0,
            grid=grid,
            in_specs=[
                pl.BlockSpec((tr, D), lambda i, j: (i, 0)),    # x (full rows)
                pl.BlockSpec((1, D), lambda i, j: (0, 0)),     # gamma
                pl.BlockSpec((1, D), lambda i, j: (0, 0)),     # beta
                pl.BlockSpec((D, tn), lambda i, j: (0, j)),    # W column tile
                pl.BlockSpec((1, tn), lambda i, j: (0, j)),    # bias column tile
            ],
            out_specs=pl.BlockSpec((tr, tn), lambda i, j: (i, j)),
            scratch_shapes=[pltpu.VMEM((tr, D), mxu_dtype)],   # cached LN(x)
        ),
        compiler_params=pltpu.CompilerParams(
            dimension_semantics=("parallel", "arbitrary"),
            vmem_limit_bytes=vmem_limit,
        ),
        # Safe: each output block is written strictly after its x row-block
        # has been loaded into VMEM, and x blocks are never revisited.
        input_output_aliases={0: 0},
    )(x2, gamma2, beta2, w_mxu, b2)

    if rows_p != rows:
        out2 = out2[:rows]
    return out2.reshape(B, S, D)


def _reference(x, gamma, beta, w, b, mxu_dtype=None):
    """Pure-JAX reference mirroring the PyTorch module (eval-mode dropout).

    If mxu_dtype is given, the sublayer matmul uses the same reduced-precision
    input path as the kernel (fp32 accumulation)."""
    xf = x.astype(jnp.float32)
    mean = jnp.mean(xf, axis=-1, keepdims=True)
    diff = xf - mean
    var_unbiased = jnp.sum(diff * diff, axis=-1, keepdims=True) / (xf.shape[-1] - 1)
    std = jnp.sqrt(var_unbiased)
    inv = 1.0 / (std + EPS)
    normed = gamma * (diff * inv) + beta
    if mxu_dtype is not None:
        y = jnp.dot(normed.astype(mxu_dtype), w.astype(mxu_dtype),
                    preferred_element_type=jnp.float32)
    else:
        y = normed @ w
    y = y + b
    return (xf + y).astype(x.dtype)


if __name__ == "__main__":
    key = jax.random.PRNGKey(0)
    B, S, D = 2, 8, 128  # small shapes; D = lane width for clean tiling

    kx, kw, kb = jax.random.split(key, 3)
    x = jax.random.normal(kx, (B, S, D), dtype=jnp.float32)

    # LayerNorm params exactly as in the module's __init__: ones / zeros.
    gamma = jnp.ones((D,), dtype=jnp.float32)
    beta = jnp.zeros((D,), dtype=jnp.float32)

    # Deterministic sublayer (dense) parameters.
    w = jax.random.normal(kw, (D, D), dtype=jnp.float32) * (1.0 / jnp.sqrt(D))
    b = jax.random.normal(kb, (D,), dtype=jnp.float32) * 0.01

    out = sublayer_connection(x, gamma, beta, w, b)
    out = jax.block_until_ready(out)
    assert out.shape == (B, S, D)

    # Tight check: reference using the same bf16-input / fp32-accumulate
    # matmul path as the kernel.
    ref_path = _reference(x, gamma, beta, w, b, mxu_dtype=jnp.bfloat16)
    assert jnp.allclose(out, ref_path, atol=5e-3, rtol=5e-3), \
        "mismatch vs bf16-matmul reference"

    # Semantic check: full-fp32 reference mirroring the PyTorch module; small
    # drift expected solely from bf16 MXU inputs (fp32 accumulation).
    ref_fp32 = _reference(x, gamma, beta, w, b, mxu_dtype=None)
    assert jnp.allclose(out, ref_fp32, atol=5e-2, rtol=5e-2), \
        "mismatch vs fp32 module reference"

    print("KERNEL_OK")
</pallas_src>

<mosaic_0001>
module attributes {stable_mosaic.version = 11 : i64} {
  func.func @_sublayer_connection_kernel(%arg0: i32, %arg1: i32, %arg2: memref<16x128xf32, #tpu.memory_space<vmem>>, %arg3: memref<1x128xf32, #tpu.memory_space<vmem>>, %arg4: memref<1x128xf32, #tpu.memory_space<vmem>>, %arg5: memref<128x128xbf16, #tpu.memory_space<vmem>>, %arg6: memref<1x128xf32, #tpu.memory_space<vmem>>, %arg7: memref<16x128xf32, #tpu.memory_space<vmem>>, %arg8: memref<16x128xbf16, #tpu.memory_space<vmem>>) attributes {dimension_semantics = [#tpu.dimension_semantics<parallel>, #tpu.dimension_semantics<arbitrary>], iteration_bounds = array<i64: 1, 1>, scalar_prefetch = 0 : i64, scratch_operands = 1 : i64, tpu.core_type = #tpu.core_type<tc>, window_params = [{transform_indices = @transform_0, window_bounds = array<i64: 16, 128>}, {pipeline_mode = #tpu.pipeline_mode<synchronous>, transform_indices = @transform_1, window_bounds = array<i64: 1, 128>}, {pipeline_mode = #tpu.pipeline_mode<synchronous>, transform_indices = @transform_2, window_bounds = array<i64: 1, 128>}, {transform_indices = @transform_3, window_bounds = array<i64: 128, 128>}, {transform_indices = @transform_4, window_bounds = array<i64: 1, 128>}, {transform_indices = @transform_5, window_bounds = array<i64: 16, 128>}]} {
    %c0_i32 = arith.constant 0 : i32
    %0 = arith.cmpi eq, %arg1, %c0_i32 : i32
    %1 = arith.extui %0 : i1 to i32
    %c0_i32_0 = arith.constant 0 : i32
    %2 = arith.cmpi ne, %1, %c0_i32_0 : i32
    scf.if %2 {
      %c0_9 = arith.constant 0 : index
      %c0_10 = arith.constant 0 : index
      %15 = vector.load %arg2[%c0_9, %c0_10] : memref<16x128xf32, #tpu.memory_space<vmem>>, vector<16x128xf32>
      %cst_11 = arith.constant dense<0.000000e+00> : vector<16xf32>
      %16 = vector.multi_reduction <add>, %15, %cst_11 [1] : vector<16x128xf32> to vector<16xf32>
      %17 = vector.shape_cast %16 : vector<16xf32> to vector<16x1xf32>
      %cst_12 = arith.constant 1.280000e+02 : f32
      %18 = vector.broadcast %cst_12 : f32 to vector<16x1xf32>
      %19 = arith.divf %17, %18 : vector<16x1xf32>
      %20 = vector.broadcast %19 : vector<16x1xf32> to vector<16x128xf32>
      %21 = arith.subf %15, %20 : vector<16x128xf32>
      %22 = arith.mulf %21, %21 : vector<16x128xf32>
      %cst_13 = arith.constant dense<0.000000e+00> : vector<16xf32>
      %23 = vector.multi_reduction <add>, %22, %cst_13 [1] : vector<16x128xf32> to vector<16xf32>
      %24 = vector.shape_cast %23 : vector<16xf32> to vector<16x1xf32>
      %cst_14 = arith.constant 1.270000e+02 : f32
      %25 = vector.broadcast %cst_14 : f32 to vector<16x1xf32>
      %26 = arith.divf %24, %25 : vector<16x1xf32>
      %27 = math.sqrt %26 : vector<16x1xf32>
      %cst_15 = arith.constant 9.99999997E-7 : f32
      %28 = vector.broadcast %cst_15 : f32 to vector<16x1xf32>
      %29 = arith.addf %27, %28 : vector<16x1xf32>
      %30 = tpu.reciprocal %29 : vector<16x1xf32> -> vector<16x1xf32>
      %c0_16 = arith.constant 0 : index
      %c0_17 = arith.constant 0 : index
      %31 = vector.load %arg3[%c0_16, %c0_17] : memref<1x128xf32, #tpu.memory_space<vmem>>, vector<1x128xf32>
      %32 = vector.broadcast %30 : vector<16x1xf32> to vector<16x128xf32>
      %33 = arith.mulf %21, %32 : vector<16x128xf32>
      %34 = vector.broadcast %31 : vector<1x128xf32> to vector<16x128xf32>
      %35 = arith.mulf %34, %33 : vector<16x128xf32>
      %c0_18 = arith.constant 0 : index
      %c0_19 = arith.constant 0 : index
      %36 = vector.load %arg4[%c0_18, %c0_19] : memref<1x128xf32, #tpu.memory_space<vmem>>, vector<1x128xf32>
      %37 = vector.broadcast %36 : vector<1x128xf32> to vector<16x128xf32>
      %38 = arith.addf %35, %37 : vector<16x128xf32>
      %39 = arith.truncf %38 : vector<16x128xf32> to vector<16x128xbf16>
      %c0_20 = arith.constant 0 : index
      %c0_21 = arith.constant 0 : index
      %40 = vector.load %arg8[%c0_20, %c0_21] : memref<16x128xbf16, #tpu.memory_space<vmem>>, vector<16x128xbf16>
      tpu.vector_store %arg8[%c0_20, %c0_21], %39 {strides = array<i32>} : memref<16x128xbf16, #tpu.memory_space<vmem>>, vector<16x128xbf16>,
    } else {
    }
    %c0 = arith.constant 0 : index
    %c0_1 = arith.constant 0 : index
    %3 = vector.load %arg8[%c0, %c0_1] : memref<16x128xbf16, #tpu.memory_space<vmem>>, vector<16x128xbf16>
    %c0_2 = arith.constant 0 : index
    %c0_3 = arith.constant 0 : index
    %4 = vector.load %arg5[%c0_2, %c0_3] : memref<128x128xbf16, #tpu.memory_space<vmem>>, vector<128x128xbf16>
    %cst = arith.constant dense<0.000000e+00> : vector<16x128xf32>
    %5 = tpu.matmul %3, %4, %cst {dimension_numbers = #tpu.dot_dimension_numbers<[1], [0], [0], [1], [0, 0, 1, 1], [], []>} : vector<16x128xbf16>, vector<128x128xbf16>, vector<16x128xf32> -> vector<16x128xf32>
    %c0_4 = arith.constant 0 : index
    %c0_5 = arith.constant 0 : index
    %6 = vector.load %arg6[%c0_4, %c0_5] : memref<1x128xf32, #tpu.memory_space<vmem>>, vector<1x128xf32>
    %7 = vector.broadcast %6 : vector<1x128xf32> to vector<16x128xf32>
    %8 = arith.addf %5, %7 : vector<16x128xf32>
    %c128_i32 = arith.constant 128 : i32
    %9 = arith.muli %arg1, %c128_i32 : i32
    %10 = tpu.assume_multiple %9, 128 : i32
    %c0_6 = arith.constant 0 : index
    %11 = arith.index_cast %10 : i32 to index
    %12 = vector.load %arg2[%c0_6, %11] : memref<16x128xf32, #tpu.memory_space<vmem>>, vector<16x128xf32>
    %13 = arith.addf %12, %8 : vector<16x128xf32>
    %c0_7 = arith.constant 0 : index
    %c0_8 = arith.constant 0 : index
    %14 = vector.load %arg7[%c0_7, %c0_8] : memref<16x128xf32, #tpu.memory_space<vmem>>, vector<16x128xf32>
    tpu.vector_store %arg7[%c0_7, %c0_8], %13 {strides = array<i32>} : memref<16x128xf32, #tpu.memory_space<vmem>>, vector<16x128xf32>,
    return
  }
  func.func @transform_0(%arg0: i32, %arg1: i32) -> (i32, i32) {
    %c0_i32 = arith.constant 0 : i32
    %c0_i32_0 = arith.constant 0 : i32
    return %arg0, %c0_i32 : i32, i32
  }
  func.func @transform_1(%arg0: i32, %arg1: i32) -> (i32, i32) {
    %c0_i32 = arith.constant 0 : i32
    %c0_i32_0 = arith.constant 0 : i32
    %c0_i32_1 = arith.constant 0 : i32
    return %c0_i32, %c0_i32_0 : i32, i32
  }
  func.func @transform_2(%arg0: i32, %arg1: i32) -> (i32, i32) {
    %c0_i32 = arith.constant 0 : i32
    %c0_i32_0 = arith.constant 0 : i32
    %c0_i32_1 = arith.constant 0 : i32
    return %c0_i32, %c0_i32_0 : i32, i32
  }
  func.func @transform_3(%arg0: i32, %arg1: i32) -> (i32, i32) {
    %c0_i32 = arith.constant 0 : i32
    %c0_i32_0 = arith.constant 0 : i32
    return %c0_i32, %arg1 : i32, i32
  }
  func.func @transform_4(%arg0: i32, %arg1: i32) -> (i32, i32) {
    %c0_i32 = arith.constant 0 : i32
    %c0_i32_0 = arith.constant 0 : i32
    return %c0_i32, %arg1 : i32, i32
  }
  func.func @transform_5(%arg0: i32, %arg1: i32) -> (i32, i32) {
    %c0_i32 = arith.constant 0 : i32
    return %arg0, %arg1 : i32, i32
  }
}

</mosaic_0001>

<llo_original>
// kernel: tpu_custom_call.1
$region0: #{tpu_custom_call.1}
  #allocation0 [shape = 'u32[]', space=smem, size = 0x4, offset = 0x4, fixed_abs, tag = 'smem constant byte address 0x4 - core index']
  #allocation1 [shape = 'u32[144,128]{1,0:T(1,128)}', space=vmem, size = 0x12000, scoped, tag = 'internal scratch']
  #allocation2 [shape = 'bf16[16,128]{1,0:T(8,128)(2,1)}', space=vmem, size = 0x1000, scoped, tag = 'scratch operand']
  %s0 = inlined_call_operand.hbm [shape: f32[16,128], index: 0, kind: input, shape index: {}, may-alias: {0,5}]
  %s1 = inlined_call_operand.vmem [shape: f32[1,128], index: 1, kind: input, shape index: {}]
  %s2 = inlined_call_operand.vmem [shape: f32[1,128], index: 2, kind: input, shape index: {}]
  %s3 = inlined_call_operand.hbm [shape: bf16[128,128], index: 3, kind: input, shape index: {}]
  %s4 = inlined_call_operand.vmem [shape: f32[1,128], index: 4, kind: input, shape index: {}]
  %s5 = inlined_call_operand.hbm [shape: f32[16,128], index: 5, kind: output, shape index: {}, may-alias: {0,5}]
  %s6 = sld [smem:[#allocation0]]
  $region42: #{tpu_custom_call.1} parent=0
    _
  %s8 = ssub.s32 1, %s6
  %s9 = scalar_select 0, %s8, %s6
  $region1: #{tpu_custom_call.1} parent=0
    #allocation3 [shape = 'u8[8192]{0}', space=vmem, size = 0x2000, scoped, tag = 'input window, operand 0, single buffered']
    #allocation4 [shape = 's32[1]{0}', space=sflag, size = 0x4, scoped, tag = 'scoped memory for tpu_custom_call.1']
    #allocation5 [shape = 's32[1]{0}', space=sflag, size = 0x4, scoped, tag = 'scoped memory for tpu_custom_call.1']
    #allocation6 [shape = 'u8[32768]{0}', space=vmem, size = 0x8000, scoped, tag = 'input window, operand 3, single buffered']
    #allocation7 [shape = 's32[1]{0}', space=sflag, size = 0x4, scoped, tag = 'scoped memory for tpu_custom_call.1']
    #allocation8 [shape = 'u8[8192]{0}', space=vmem, size = 0x2000, scoped, tag = 'output window, operand 0, single buffered']
    %10 = vsyncpa [#allocation4], 0
    %11 = vsyncpa [#allocation7], 0
    %12 = vsyncpa [#allocation5], 0
    // Predicated region
    $region2: #{tpu_custom_call.1} parent=1 // pred_check
      _
    $region3: #{tpu_custom_call.1} parent=1 // pred_check_branch
      %14 = sbr.rel (0) target = $region5
    $region4: #{tpu_custom_call.1} parent=1 // pred_region
      %s16 = ssub.s32 256, 256
      %17 = vsyncadd [#allocation4], %s16
      %s18 = sshll.u32 [#allocation3], 4
      %s19 = int_to_ptr.vmem [resolvable:$true] %s18
      %24 = dma.hbm_to_vmem [thread:$0]  %s0, 256, %s19, [#allocation4], 128, 128, 8
    $region5: #{tpu_custom_call.1} parent=1 // pred_fallthru
      _
    // Predicated region
    $region6: #{tpu_custom_call.1} parent=1 // pred_check
      _
    $region7: #{tpu_custom_call.1} parent=1 // pred_check_branch
      %26 = sbr.rel (0) target = $region9
    $region8: #{tpu_custom_call.1} parent=1 // pred_region
      _
    $region9: #{tpu_custom_call.1} parent=1 // pred_fallthru
      _
    // Predicated region
    $region10: #{tpu_custom_call.1} parent=1 // pred_check
      _
    $region11: #{tpu_custom_call.1} parent=1 // pred_check_branch
      %28 = sbr.rel (0) target = $region13
    $region12: #{tpu_custom_call.1} parent=1 // pred_region
      _
    $region13: #{tpu_custom_call.1} parent=1 // pred_fallthru
      _
    // Predicated region
    $region14: #{tpu_custom_call.1} parent=1 // pred_check
      _
    $region15: #{tpu_custom_call.1} parent=1 // pred_check_branch
      %30 = sbr.rel (0) target = $region17
    $region16: #{tpu_custom_call.1} parent=1 // pred_region
      %s32 = ssub.s32 1024, 1024
      %33 = vsyncadd [#allocation7], %s32
      %s34 = sshll.u32 [#allocation6], 4
      %s35 = int_to_ptr.vmem [resolvable:$true] %s34
      %40 = dma.hbm_to_vmem [thread:$0]  %s3, 1024, %s35, [#allocation7], 64, 64, 4
    $region17: #{tpu_custom_call.1} parent=1 // pred_fallthru
      _
    // Predicated region
    $region18: #{tpu_custom_call.1} parent=1 // pred_check
      _
    $region19: #{tpu_custom_call.1} parent=1 // pred_check_branch
      %42 = sbr.rel (0) target = $region21
    $region20: #{tpu_custom_call.1} parent=1 // pred_region
      _
    $region21: #{tpu_custom_call.1} parent=1 // pred_fallthru
      _
    // Predicated region
    $region22: #{tpu_custom_call.1} parent=1 // pred_check
      _
    $region23: #{tpu_custom_call.1} parent=1 // pred_check_branch
      %44 = sbr.rel (0) target = $region25
    $region24: #{tpu_custom_call.1} parent=1 // pred_region
      %45 = dma.done [#allocation4], 256
    $region25: #{tpu_custom_call.1} parent=1 // pred_fallthru
      _
    // Predicated region
    $region26: #{tpu_custom_call.1} parent=1 // pred_check
      _
    $region27: #{tpu_custom_call.1} parent=1 // pred_check_branch
      %47 = sbr.rel (0) target = $region29
    $region28: #{tpu_custom_call.1} parent=1 // pred_region
      %48 = dma.done [#allocation7], 1024
    $region29: #{tpu_custom_call.1} parent=1 // pred_fallthru
      _
    %p50 = scmp.eq.s32.totalorder 0, 0
    // Predicated region
    $region30: #{tpu_custom_call.1} parent=1 // pred_check
      %p51 = pneg %p50
    $region31: #{tpu_custom_call.1} parent=1 // pred_check_branch
      %53 = sbr.rel (%p51) target = $region33
    $region32: #{tpu_custom_call.1} parent=1 // pred_region
      %v54 = vld [vmem:[#allocation3] sm:$0xff]
      %v55 = vld [vmem:[#allocation3 + $0x8] sm:$0xff]
      %56 = vadd.xlane.f32.xlu0 %v54
      %v57 = vpop.xlane.xlu0 %56
      %58 = vadd.xlane.f32.xlu0 %v55
      %v59 = vpop.xlane.xlu0 %58
      %v60 = vrcp.pop 128.0
      %v61 = vmul.f32 %v57, %v60
      %v62 = vmul.f32 %v59, %v60
      %v63 = vsub.f32 %v54, %v61
      %v64 = vsub.f32 %v55, %v62
      %v65 = vmul.f32 %v63, %v63
      %v66 = vmul.f32 %v64, %v64
      %67 = vadd.xlane.f32.xlu0 %v65
      %v68 = vpop.xlane.xlu0 %67
      %69 = vadd.xlane.f32.xlu0 %v66
      %v70 = vpop.xlane.xlu0 %69
      %v71 = vrcp.pop 127.0
      %v72 = vmul.f32 %v68, %v71
      %v73 = vmul.f32 %v70, %v71
      %v74 = vrsqrt.pop %v72
      %v75 = vmul.f32 %v72, %v74
      %vm76 = vcmp.eq.f32.partialorder %v72, inf
      %v77 = vsel %vm76, %v72, %v75
      %vm78 = vcmp.eq.f32.partialorder %v72, 0.0
      %v79 = vand.u32 %v72, 2147483648
      %v80 = vsel %vm78, %v79, %v77
      %v81 = vrsqrt.pop %v73
      %v82 = vmul.f32 %v73, %v81
      %vm83 = vcmp.eq.f32.partialorder %v73, inf
      %v84 = vsel %vm83, %v73, %v82
      %vm85 = vcmp.eq.f32.partialorder %v73, 0.0
      %v86 = vand.u32 %v73, 2147483648
      %v87 = vsel %vm85, %v86, %v84
      %v88 = vadd.f32 %v80, 1e-06
      %v89 = vadd.f32 %v87, 1e-06
      %v90 = vrcp.pop %v88
      %v91 = vrcp.pop %v89
      %v92 = vld [vmem:[%s1] sm:$0x1]
      %v93 = vmul.f32 %v63, %v90
      %v94 = vmul.f32 %v64, %v91
      %v96 = vlaneseq
      %v97 = vshrl.u32 %v96, 7
      %v98 = vsub.s32 0, %v97
      %v99 = vrot.slane %v92, %v98
      %v101 = vmul.f32 %v99, %v93
      %v102 = vmul.f32 %v99, %v94
      %v103 = vld [vmem:[%s2] sm:$0x1]
      %v105 = vlaneseq
      %v106 = vshrl.u32 %v105, 7
      %v107 = vsub.s32 0, %v106
      %v108 = vrot.slane %v103, %v107
      %v110 = vadd.f32 %v101, %v108
      %v111 = vadd.f32 %v102, %v108
      %v112 = vpack.c.bf16 %v111, %v110
      %v114 = vunpack.c.l.b16 %v112
      %v115 = vunpack.c.h.b16 %v112
      %v116 = vpack.c.b16 %v114, %v114
      %v117 = vpack.c.b16 %v115, %v115
      %120 = vst [vmem:[#allocation2] sm:$0xf] %v116
      %121 = vst [vmem:[#allocation2 + $0x4] sm:$0xf] %v117
    $region33: #{tpu_custom_call.1} parent=1 // pred_fallthru
      _
    %v122 = vld [vmem:[#allocation2] sm:$0xf]
    %v123 = vld [vmem:[#allocation2 + $0x4] sm:$0xf]
    %v124 = vld [vmem:[#allocation6] sm:$0xf]
    %v125 = vld [vmem:[#allocation6 + $0x4] sm:$0xf]
    %v126 = vld [vmem:[#allocation6 + $0x8] sm:$0xf]
    %v127 = vld [vmem:[#allocation6 + $0xc] sm:$0xf]
    %v128 = vld [vmem:[#allocation6 + $0x10] sm:$0xf]
    %v129 = vld [vmem:[#allocation6 + $0x14] sm:$0xf]
    %v130 = vld [vmem:[#allocation6 + $0x18] sm:$0xf]
    %v131 = vld [vmem:[#allocation6 + $0x1c] sm:$0xf]
    %v132 = vld [vmem:[#allocation6 + $0x20] sm:$0xf]
    %v133 = vld [vmem:[#allocation6 + $0x24] sm:$0xf]
    %v134 = vld [vmem:[#allocation6 + $0x28] sm:$0xf]
    %v135 = vld [vmem:[#allocation6 + $0x2c] sm:$0xf]
    %v136 = vld [vmem:[#allocation6 + $0x30] sm:$0xf]
    %v137 = vld [vmem:[#allocation6 + $0x34] sm:$0xf]
    %v138 = vld [vmem:[#allocation6 + $0x38] sm:$0xf]
    %v139 = vld [vmem:[#allocation6 + $0x3c] sm:$0xf]
    %v140 = vld [vmem:[%s4] sm:$0x1]
    %v142 = vlaneseq
    %v143 = vshrl.u32 %v142, 7
    %v144 = vsub.s32 0, %v143
    %v145 = vrot.slane %v140, %v144
    %v149 = vunpack.c.l.b16 %v122
    %v150 = vunpack.c.l.b16 %v123
    %v151 = vpack.c.b16 %v150, %v149
    %v169 = vunpack.c.l.b16 %v124
    %v170 = vunpack.c.l.b16 %v125
    %v171 = vunpack.c.l.b16 %v126
    %v172 = vunpack.c.l.b16 %v127
    %v173 = vunpack.c.l.b16 %v128
    %v174 = vunpack.c.l.b16 %v129
    %v175 = vunpack.c.l.b16 %v130
    %v176 = vunpack.c.l.b16 %v131
    %v177 = vunpack.c.l.b16 %v132
    %v178 = vunpack.c.l.b16 %v133
    %v179 = vunpack.c.l.b16 %v134
    %v180 = vunpack.c.l.b16 %v135
    %v181 = vunpack.c.l.b16 %v136
    %v182 = vunpack.c.l.b16 %v137
    %v183 = vunpack.c.l.b16 %v138
    %v184 = vunpack.c.l.b16 %v139
    %v185 = vpack.c.b16 %v170, %v169
    %v186 = vpack.c.b16 %v172, %v171
    %v187 = vpack.c.b16 %v174, %v173
    %v188 = vpack.c.b16 %v176, %v175
    %v189 = vpack.c.b16 %v178, %v177
    %v190 = vpack.c.b16 %v180, %v179
    %v191 = vpack.c.b16 %v182, %v181
    %v192 = vpack.c.b16 %v184, %v183
    %201 = vmatprep.subr.bf16.mxu0 0
    %202 = vmatpush1.bf16.msra.mxu0 %v192
    %203 = vmatprep.subr.bf16.mxu0 0
    %204 = vmatpush1.bf16.msra.mxu0 %v191
    %205 = vmatprep.subr.bf16.mxu0 0
    %206 = vmatpush1.bf16.msra.mxu0 %v190
    %207 = vmatprep.subr.bf16.mxu0 0
    %208 = vmatpush1.bf16.msra.mxu0 %v189
    %209 = vmatprep.subr.bf16.mxu0 0
    %210 = vmatpush1.bf16.msra.mxu0 %v188
    %211 = vmatprep.subr.bf16.mxu0 0
    %212 = vmatpush1.bf16.msra.mxu0 %v187
    %213 = vmatprep.subr.bf16.mxu0 0
    %214 = vmatpush1.bf16.msra.mxu0 %v186
    %215 = vmatprep.subr.bf16.mxu0 0
    %216 = vmatpush1.bf16.msra.mxu0 %v185
    %217 = vmatprep.subr.bf16.mxu0 0
    %218 = vmatpush2.bf16.msra.mxu0 0
    %219 = vmatprep.subr.bf16.mxu0 0
    %220 = vmatpush2.bf16.msra.mxu0 0
    %221 = vmatprep.subr.bf16.mxu0 0
    %222 = vmatpush2.bf16.msra.mxu0 0
    %223 = vmatprep.subr.bf16.mxu0 0
    %224 = vmatpush2.bf16.msra.mxu0 0
    %225 = vmatprep.subr.bf16.mxu0 0
    %226 = vmatpush2.bf16.msra.mxu0 0
    %227 = vmatprep.subr.bf16.mxu0 0
    %228 = vmatpush2.bf16.msra.mxu0 0
    %229 = vmatprep.subr.bf16.mxu0 0
    %230 = vmatpush2.bf16.msra.mxu0 0
    %231 = vmatprep.subr.bf16.mxu0 0
    %232 = vmatpush2.bf16.msra.mxu0 0
    %233 = vmatprep.mubr.bf16.mxu0 0
    %234 = vmatmul.mubr.bf16.gmra.mxu0 %v151
    %v235 = vpop.f32.mrf.mxu0
    %v236 = vadd.f32 %v145, %v235
    %v237 = vpop.f32.mrf.mxu0
    %v238 = vpop.f32.mrf.mxu0
    %v239 = vadd.f32 %v145, %v238
    %v240 = vpop.f32.mrf.mxu0
    %241 = vdwg.mxu0
    %s242 = smul.u32 0, 128
    %s243 = sshra.s32 %s242, 7
    %s244 = sand.u32 %s242, 127
    %s245 = scalar_lea.vmem [#allocation3], %s243
    %v246 = vld [vmem:[%s245] sm:$0xff]
    %v247 = vld [vmem:[%s245 + $0x8] sm:$0xff]
    %v248 = vadd.f32 %v246, %v236
    %v249 = vadd.f32 %v247, %v239
    %250 = vst [vmem:[#allocation8] sm:$0xff] %v248
    %251 = vst [vmem:[#allocation8 + $0x8] sm:$0xff] %v249
    // Predicated region
    $region34: #{tpu_custom_call.1} parent=1 // pred_check
      _
    $region35: #{tpu_custom_call.1} parent=1 // pred_check_branch
      %253 = sbr.rel (0) target = $region37
    $region36: #{tpu_custom_call.1} parent=1 // pred_region
      %s255 = ssub.s32 256, 256
      %256 = vsyncadd [#allocation5], %s255
      %s257 = sshll.u32 [#allocation8], 4
      %s258 = int_to_ptr.vmem [resolvable:$true] %s257
      %263 = dma.vmem_to_hbm [thread:$0]  %s258, 256, %s5, [#allocation5], 128, 128, 8
    $region37: #{tpu_custom_call.1} parent=1 // pred_fallthru
      _
    // Predicated region
    $region38: #{tpu_custom_call.1} parent=1 // pred_check
      _
    $region39: #{tpu_custom_call.1} parent=1 // pred_check_branch
      %265 = sbr.rel (0) target = $region41
    $region40: #{tpu_custom_call.1} parent=1 // pred_region
      %266 = dma.done [#allocation5], 256
    $region41: #{tpu_custom_call.1} parent=1 // pred_fallthru
      _
    %267 = vsyncpa [#allocation4], 1
    %268 = vsyncpa [#allocation7], 1
    %269 = vsyncpa [#allocation5], 1

</llo_original>
